<compile_context>
chip_gen: v7x
topology: tpu7x:2x2x1
jax: 0.10.0
libtpu: 0.0.40
codegen_flags: <defaults>
</compile_context>

<pallas_src>
import jax
import jax.numpy as jnp
from jax import lax
from jax.experimental import pallas as pl
from jax.experimental.pallas import tpu as pltpu

LN_EPS = 1e-5


def add_norm_kernel(x_ref, m_ref, q_ref, g_ref, b_ref, o_ref):
    # x_ref, m_ref, o_ref : (1, tile_t, H)
    # q_ref               : (1, tile_t, 1)
    # g_ref, b_ref        : (1, H)
    x = x_ref[...].astype(jnp.float32)
    m = m_ref[...].astype(jnp.float32)
    q = q_ref[...].astype(jnp.float32)           # broadcasts over H

    # residual add with masked memory (dropout = identity in eval mode)
    y = x + m * q

    # LayerNorm over the hidden (lane) axis, f32 accumulation
    mean = jnp.mean(y, axis=-1, keepdims=True)
    centered = y - mean
    var = jnp.mean(centered * centered, axis=-1, keepdims=True)
    normed = centered * lax.rsqrt(var + LN_EPS)  # rsqrt -> EUP slot (free here)

    gamma = g_ref[...].astype(jnp.float32)[:, None, :]   # (1, 1, H), hoisted once
    beta = b_ref[...].astype(jnp.float32)[:, None, :]    # (1, 1, H)
    o_ref[...] = (normed * gamma + beta).astype(o_ref.dtype)


def _pick_tile_t(T, offset, cap=512):
    """Largest tile <= cap that is a multiple of 8, divides T, and divides the
    -T memory offset (so the slice can live purely in the BlockSpec index_map)."""
    for cand in range(min(cap, T), 7, -1):
        if cand % 8 == 0 and T % cand == 0 and offset % cand == 0:
            return cand
    return None


def add_norm(inputs, memory, query_mask, gamma, beta, *, max_tile_t=512):
    """inputs: (B, T, H), memory: (B, T_mem, H) with T_mem >= T, query_mask: (B, T)."""
    B, T, H = inputs.shape
    T_mem = memory.shape[1]
    offset = T_mem - T

    tile_t = _pick_tile_t(T, offset, cap=max_tile_t)
    if tile_t is not None:
        # No-copy path: the -T offset is folded into the memory index_map.
        mem_op = memory
        mem_t_block_off = offset // tile_t
    else:
        # Offset / T not tile-alignable: fall back to a materialized slice with
        # a whole-T block (same semantics, one extra HBM pass over memory).
        mem_op = memory[:, -T:, :]
        tile_t = T
        mem_t_block_off = 0

    n_t = T // tile_t
    grid = (B, n_t)

    # glue: mask -> (B, T, 1) (broadcast over H happens in-kernel), params -> (1, H)
    qm = query_mask.astype(jnp.float32).reshape(B, T, 1)
    g2 = gamma.reshape(1, H)
    b2 = beta.reshape(1, H)

    return pl.pallas_call(
        add_norm_kernel,
        out_shape=jax.ShapeDtypeStruct((B, T, H), inputs.dtype),
        grid_spec=pltpu.PrefetchScalarGridSpec(
            num_scalar_prefetch=0,
            grid=grid,
            in_specs=[
                pl.BlockSpec((1, tile_t, H), lambda b, t: (b, t, 0)),           # inputs
                pl.BlockSpec((1, tile_t, H),
                             lambda b, t: (b, t + mem_t_block_off, 0)),          # memory (-T offset)
                pl.BlockSpec((1, tile_t, 1), lambda b, t: (b, t, 0)),           # query mask
                pl.BlockSpec((1, H), lambda b, t: (0, 0)),                      # gamma
                pl.BlockSpec((1, H), lambda b, t: (0, 0)),                      # beta
            ],
            out_specs=pl.BlockSpec((1, tile_t, H), lambda b, t: (b, t, 0)),
        ),
        compiler_params=pltpu.CompilerParams(
            dimension_semantics=("parallel", "parallel")),
    )(inputs, mem_op, qm, g2, b2)


def add_norm_ref(inputs, memory, query_mask, gamma, beta):
    """Plain-JAX reference matching the PyTorch forward (eval-mode dropout)."""
    B, T, H = inputs.shape
    qm = query_mask.astype(jnp.float32)[..., None]
    y = inputs.astype(jnp.float32) + memory[:, -T:, :].astype(jnp.float32) * qm
    mean = jnp.mean(y, axis=-1, keepdims=True)
    var = jnp.mean((y - mean) ** 2, axis=-1, keepdims=True)
    out = (y - mean) / jnp.sqrt(var + LN_EPS) * gamma + beta
    return out.astype(inputs.dtype)


if __name__ == "__main__":
    key = jax.random.PRNGKey(0)
    k1, k2, k3, k4, k5 = jax.random.split(key, 5)

    B, T, H = 2, 8, 32
    T_mem_aligned = 16   # offset 8  -> exercises the no-copy (BlockSpec offset) path
    T_mem_ragged = 13    # offset 5  -> exercises the wrapper-slice fallback path

    inputs = jax.random.normal(k1, (B, T, H), dtype=jnp.float32)
    memory = jax.random.normal(k2, (B, T_mem_aligned, H), dtype=jnp.float32)
    query_mask = (jax.random.uniform(k3, (B, T)) > 0.3).astype(jnp.float32)

    # LayerNorm parameters (deterministic, slightly perturbed from defaults)
    gamma = jnp.ones((H,), jnp.float32) + 0.1 * jax.random.normal(k4, (H,), dtype=jnp.float32)
    beta = 0.1 * jax.random.normal(k5, (H,), dtype=jnp.float32)

    out = jax.block_until_ready(add_norm(inputs, memory, query_mask, gamma, beta))
    ref = add_norm_ref(inputs, memory, query_mask, gamma, beta)
    assert out.shape == (B, T, H) and out.dtype == inputs.dtype
    assert jnp.max(jnp.abs(out - ref)) < 1e-4

    memory2 = jax.random.normal(k2, (B, T_mem_ragged, H), dtype=jnp.float32)
    out2 = jax.block_until_ready(add_norm(inputs, memory2, query_mask, gamma, beta))
    ref2 = add_norm_ref(inputs, memory2, query_mask, gamma, beta)
    assert jnp.max(jnp.abs(out2 - ref2)) < 1e-4

    print("KERNEL_OK")
</pallas_src>

<mosaic_0001>
module attributes {stable_mosaic.version = 11 : i64} {
  func.func @add_norm_kernel(%arg0: i32, %arg1: i32, %arg2: memref<1x8x32xf32, #tpu.memory_space<vmem>>, %arg3: memref<1x8x32xf32, #tpu.memory_space<vmem>>, %arg4: memref<1x8x1xf32, #tpu.memory_space<vmem>>, %arg5: memref<1x32xf32, #tpu.memory_space<vmem>>, %arg6: memref<1x32xf32, #tpu.memory_space<vmem>>, %arg7: memref<1x8x32xf32, #tpu.memory_space<vmem>>) attributes {dimension_semantics = [#tpu.dimension_semantics<parallel>, #tpu.dimension_semantics<parallel>], iteration_bounds = array<i64: 2, 1>, scalar_prefetch = 0 : i64, scratch_operands = 0 : i64, tpu.core_type = #tpu.core_type<tc>, window_params = [{transform_indices = @transform_0, window_bounds = array<i64: 1, 8, 32>}, {transform_indices = @transform_1, window_bounds = array<i64: 1, 8, 32>}, {transform_indices = @transform_2, window_bounds = array<i64: 1, 8, 1>}, {pipeline_mode = #tpu.pipeline_mode<synchronous>, transform_indices = @transform_3, window_bounds = array<i64: 1, 32>}, {pipeline_mode = #tpu.pipeline_mode<synchronous>, transform_indices = @transform_4, window_bounds = array<i64: 1, 32>}, {transform_indices = @transform_5, window_bounds = array<i64: 1, 8, 32>}]} {
    %c0 = arith.constant 0 : index
    %c0_0 = arith.constant 0 : index
    %c0_1 = arith.constant 0 : index
    %0 = vector.load %arg2[%c0, %c0_0, %c0_1] : memref<1x8x32xf32, #tpu.memory_space<vmem>>, vector<1x8x32xf32>
    %c0_2 = arith.constant 0 : index
    %c0_3 = arith.constant 0 : index
    %c0_4 = arith.constant 0 : index
    %1 = vector.load %arg3[%c0_2, %c0_3, %c0_4] : memref<1x8x32xf32, #tpu.memory_space<vmem>>, vector<1x8x32xf32>
    %c0_5 = arith.constant 0 : index
    %c0_6 = arith.constant 0 : index
    %c0_7 = arith.constant 0 : index
    %2 = vector.load %arg4[%c0_5, %c0_6, %c0_7] : memref<1x8x1xf32, #tpu.memory_space<vmem>>, vector<1x8x1xf32>
    %3 = vector.broadcast %2 : vector<1x8x1xf32> to vector<1x8x32xf32>
    %4 = arith.mulf %1, %3 : vector<1x8x32xf32>
    %5 = arith.addf %0, %4 : vector<1x8x32xf32>
    %cst = arith.constant dense<0.000000e+00> : vector<1x8xf32>
    %6 = vector.multi_reduction <add>, %5, %cst [2] : vector<1x8x32xf32> to vector<1x8xf32>
    %7 = vector.shape_cast %6 : vector<1x8xf32> to vector<1x8x1xf32>
    %cst_8 = arith.constant 3.200000e+01 : f32
    %8 = vector.broadcast %cst_8 : f32 to vector<1x8x1xf32>
    %9 = arith.divf %7, %8 : vector<1x8x1xf32>
    %10 = vector.broadcast %9 : vector<1x8x1xf32> to vector<1x8x32xf32>
    %11 = arith.subf %5, %10 : vector<1x8x32xf32>
    %12 = arith.mulf %11, %11 : vector<1x8x32xf32>
    %cst_9 = arith.constant dense<0.000000e+00> : vector<1x8xf32>
    %13 = vector.multi_reduction <add>, %12, %cst_9 [2] : vector<1x8x32xf32> to vector<1x8xf32>
    %14 = vector.shape_cast %13 : vector<1x8xf32> to vector<1x8x1xf32>
    %cst_10 = arith.constant 3.200000e+01 : f32
    %15 = vector.broadcast %cst_10 : f32 to vector<1x8x1xf32>
    %16 = arith.divf %14, %15 : vector<1x8x1xf32>
    %cst_11 = arith.constant 9.99999974E-6 : f32
    %17 = vector.broadcast %cst_11 : f32 to vector<1x8x1xf32>
    %18 = arith.addf %16, %17 : vector<1x8x1xf32>
    %19 = math.rsqrt %18 : vector<1x8x1xf32>
    %20 = vector.broadcast %19 : vector<1x8x1xf32> to vector<1x8x32xf32>
    %21 = arith.mulf %11, %20 : vector<1x8x32xf32>
    %c0_12 = arith.constant 0 : index
    %c0_13 = arith.constant 0 : index
    %22 = vector.load %arg5[%c0_12, %c0_13] : memref<1x32xf32, #tpu.memory_space<vmem>>, vector<1x32xf32>
    %23 = vector.shape_cast %22 : vector<1x32xf32> to vector<1x1x32xf32>
    %c0_14 = arith.constant 0 : index
    %c0_15 = arith.constant 0 : index
    %24 = vector.load %arg6[%c0_14, %c0_15] : memref<1x32xf32, #tpu.memory_space<vmem>>, vector<1x32xf32>
    %25 = vector.shape_cast %24 : vector<1x32xf32> to vector<1x1x32xf32>
    %26 = vector.broadcast %23 : vector<1x1x32xf32> to vector<1x8x32xf32>
    %27 = arith.mulf %21, %26 : vector<1x8x32xf32>
    %28 = vector.broadcast %25 : vector<1x1x32xf32> to vector<1x8x32xf32>
    %29 = arith.addf %27, %28 : vector<1x8x32xf32>
    %c0_16 = arith.constant 0 : index
    %c0_17 = arith.constant 0 : index
    %c0_18 = arith.constant 0 : index
    %30 = vector.load %arg7[%c0_16, %c0_17, %c0_18] : memref<1x8x32xf32, #tpu.memory_space<vmem>>, vector<1x8x32xf32>
    tpu.vector_store %arg7[%c0_16, %c0_17, %c0_18], %29 {strides = array<i32>} : memref<1x8x32xf32, #tpu.memory_space<vmem>>, vector<1x8x32xf32>,
    return
  }
  func.func @transform_0(%arg0: i32, %arg1: i32) -> (i32, i32, i32) {
    %c0_i32 = arith.constant 0 : i32
    %c0_i32_0 = arith.constant 0 : i32
    return %arg0, %arg1, %c0_i32 : i32, i32, i32
  }
  func.func @transform_1(%arg0: i32, %arg1: i32) -> (i32, i32, i32) {
    %c1_i32 = arith.constant 1 : i32
    %0 = arith.addi %arg1, %c1_i32 : i32
    %c0_i32 = arith.constant 0 : i32
    %c0_i32_0 = arith.constant 0 : i32
    return %arg0, %0, %c0_i32 : i32, i32, i32
  }
  func.func @transform_2(%arg0: i32, %arg1: i32) -> (i32, i32, i32) {
    %c0_i32 = arith.constant 0 : i32
    %c0_i32_0 = arith.constant 0 : i32
    return %arg0, %arg1, %c0_i32 : i32, i32, i32
  }
  func.func @transform_3(%arg0: i32, %arg1: i32) -> (i32, i32) {
    %c0_i32 = arith.constant 0 : i32
    %c0_i32_0 = arith.constant 0 : i32
    %c0_i32_1 = arith.constant 0 : i32
    return %c0_i32, %c0_i32_0 : i32, i32
  }
  func.func @transform_4(%arg0: i32, %arg1: i32) -> (i32, i32) {
    %c0_i32 = arith.constant 0 : i32
    %c0_i32_0 = arith.constant 0 : i32
    %c0_i32_1 = arith.constant 0 : i32
    return %c0_i32, %c0_i32_0 : i32, i32
  }
  func.func @transform_5(%arg0: i32, %arg1: i32) -> (i32, i32, i32) {
    %c0_i32 = arith.constant 0 : i32
    %c0_i32_0 = arith.constant 0 : i32
    return %arg0, %arg1, %c0_i32 : i32, i32, i32
  }
}

</mosaic_0001>

<llo_original>
// kernel: tpu_custom_call.1
$region0: #{tpu_custom_call.1}
  #allocation0 [shape = 'u32[]', space=smem, size = 0x4, offset = 0x4, fixed_abs, tag = 'smem constant byte address 0x4 - core index']
  #allocation1 [shape = 'u32[144,128]{1,0:T(1,128)}', space=vmem, size = 0x12000, scoped, tag = 'internal scratch']
  %s0 = inlined_call_operand.vmem [shape: f32[2,8,32], index: 0, kind: input, shape index: {}]
  %s1 = inlined_call_operand.hbm [shape: f32[2,16,32], index: 1, kind: input, shape index: {}]
  %s2 = inlined_call_operand.vmem [shape: f32[2,8,1], index: 2, kind: input, shape index: {}]
  %s3 = inlined_call_operand.vmem [shape: f32[1,32], index: 3, kind: input, shape index: {}]
  %s4 = inlined_call_operand.vmem [shape: f32[1,32], index: 4, kind: input, shape index: {}]
  %s5 = inlined_call_operand.hbm [shape: f32[2,8,32], index: 5, kind: output, shape index: {}]
  %s6 = sld [smem:[#allocation0]]
  $region57: #{tpu_custom_call.1} parent=0
    _
  %s8 = ssub.s32 1, %s6
  %s9 = scalar_select 0, %s8, %s6
  $region1: #{tpu_custom_call.1} parent=0
    #allocation2 [shape = 'u8[8192]{0}', space=vmem, size = 0x2000, scoped, tag = 'input window, operand 1']
    #allocation3 [shape = 's32[2]{0}', space=sflag, size = 0x8, scoped, tag = 'scoped memory for tpu_custom_call.1']
    #allocation4 [shape = 's32[2]{0}', space=sflag, size = 0x8, scoped, tag = 'scoped memory for tpu_custom_call.1']
    #allocation5 [shape = 'u8[8192]{0}', space=vmem, size = 0x2000, scoped, tag = 'output window, operand 0']
    %10 = vsyncpa [#allocation3], 0
    %s11 = scalar_lea.sflag [#allocation3], 1
    %12 = vsyncpa %s11, 0
    %13 = vsyncpa [#allocation4], 0
    %s14 = scalar_lea.sflag [#allocation4], 1
    %15 = vsyncpa %s14, 0
    loop: start=0, step=1, limit=4
    $region2: #{tpu_custom_call.1} parent=1 // loop_pre_header
      _
    $region3: #{tpu_custom_call.1} parent=1 // loop_header
      %s17 = sphi 0, %s21
      %p18 = scmp.ge.s32.totalorder %s17, 4
      %s24 = sphi 0, %s36
      %s25 = sphi 0, %s32
      %s26 = sphi 0, %s24
      %s27 = sphi 0, %s25
      %s28 = sphi 0, %s26
      %s29 = sphi 0, %s27
      %s41 = sphi 0, %s43
      %s44 = sphi 0, %s41
      %s45 = sphi 0, %s44
      %s61 = sphi 0, %s45
      %s71 = sphi 0, %s73
      %s74 = sphi 0, %s71
      %s75 = sphi 0, %s74
      %s91 = sphi 0, %s75
      %s99 = sphi 0, %s101
      %s102 = sphi 0, %s99
      %s103 = sphi 0, %s102
      %s119 = sphi 0, %s103
      %s123 = sphi 0, %s123
      %s125 = sphi 0, %s123
      %s126 = sphi 0, %s125
      %s140 = sphi 0, %s126
      %s144 = sphi 0, %s144
      %s146 = sphi 0, %s144
      %s147 = sphi 0, %s146
      %s161 = sphi 0, %s147
      %s169 = sphi 0, %s171
      %s172 = sphi 0, %s169
      %s173 = sphi 0, %s172
      %s189 = sphi 0, %s173
    $region4: #{tpu_custom_call.1} parent=1 // loop_header_branch
      %20 = sbr.rel (%p18) target = $region8
    $region5: #{tpu_custom_call.1} parent=1 // loop_body
      %s22 = ssub.s32 %s17, 1
      %s23 = ssub.s32 %s17, 2
      %s30 = sadd.s32 1, %s25
      %p31 = scmp.ge.s32.totalorder %s30, 1
      %s32 = scalar_select %p31, 0, %s30
      %s33 = sadd.s32 1, %s24
      %s34 = scalar_select %p31, %s33, %s24
      %p35 = scmp.ge.s32.totalorder %s34, 2
      %s36 = scalar_select %p35, 0, %s34
      %s37 = ssub.s32 %s24, %s36
      %s38 = ssub.s32 %s25, %s32
      %s39 = sor.u32 %s37, %s38
      %p40 = scmp.eq.s32.totalorder %s39, 0
      %s42 = sadd.s32 %s41, 1
      %s43 = scalar_select %p40, %s41, %s42
      %p46 = pneg %p40
      %p47 = scmp.eq.s32.totalorder %s17, 1
      %p48 = por %p46, %p47
      %p49 = scmp.ne.s32.totalorder %s41, %s44
      %p50 = scmp.eq.s32.totalorder %s17, 0
      %p51 = por %p49, %p50
      %p52 = scmp.ne.s32.totalorder %s41, %s44
      %p53 = scmp.eq.s32.totalorder %s22, 1
      %p54 = por %p52, %p53
      %p55 = scmp.ne.s32.totalorder %s44, %s45
      %p56 = scmp.eq.s32.totalorder %s22, 0
      %p57 = por %p55, %p56
      %p58 = scmp.ne.s32.totalorder %s44, %s45
      %p59 = scmp.eq.s32.totalorder %s23, 1
      %p60 = por %p58, %p59
      %p62 = scmp.ne.s32.totalorder %s45, %s61
      %p63 = scmp.eq.s32.totalorder %s23, 0
      %p64 = por %p62, %p63
      %s65 = sadd.s32 %s25, 1
      %s66 = sadd.s32 %s32, 1
      %s67 = ssub.s32 %s24, %s36
      %s68 = ssub.s32 %s65, %s66
      %s69 = sor.u32 %s67, %s68
      %p70 = scmp.eq.s32.totalorder %s69, 0
      %s72 = sadd.s32 %s71, 1
      %s73 = scalar_select %p70, %s71, %s72
      %p76 = pneg %p70
      %p77 = scmp.eq.s32.totalorder %s17, 1
      %p78 = por %p76, %p77
      %p79 = scmp.ne.s32.totalorder %s71, %s74
      %p80 = scmp.eq.s32.totalorder %s17, 0
      %p81 = por %p79, %p80
      %p82 = scmp.ne.s32.totalorder %s71, %s74
      %p83 = scmp.eq.s32.totalorder %s22, 1
      %p84 = por %p82, %p83
      %p85 = scmp.ne.s32.totalorder %s74, %s75
      %p86 = scmp.eq.s32.totalorder %s22, 0
      %p87 = por %p85, %p86
      %p88 = scmp.ne.s32.totalorder %s74, %s75
      %p89 = scmp.eq.s32.totalorder %s23, 1
      %p90 = por %p88, %p89
      %p92 = scmp.ne.s32.totalorder %s75, %s91
      %p93 = scmp.eq.s32.totalorder %s23, 0
      %p94 = por %p92, %p93
      %s95 = ssub.s32 %s24, %s36
      %s96 = ssub.s32 %s25, %s32
      %s97 = sor.u32 %s95, %s96
      %p98 = scmp.eq.s32.totalorder %s97, 0
      %s100 = sadd.s32 %s99, 1
      %s101 = scalar_select %p98, %s99, %s100
      %p104 = pneg %p98
      %p105 = scmp.eq.s32.totalorder %s17, 1
      %p106 = por %p104, %p105
      %p107 = scmp.ne.s32.totalorder %s99, %s102
      %p108 = scmp.eq.s32.totalorder %s17, 0
      %p109 = por %p107, %p108
      %p110 = scmp.ne.s32.totalorder %s99, %s102
      %p111 = scmp.eq.s32.totalorder %s22, 1
      %p112 = por %p110, %p111
      %p113 = scmp.ne.s32.totalorder %s102, %s103
      %p114 = scmp.eq.s32.totalorder %s22, 0
      %p115 = por %p113, %p114
      %p116 = scmp.ne.s32.totalorder %s102, %s103
      %p117 = scmp.eq.s32.totalorder %s23, 1
      %p118 = por %p116, %p117
      %p120 = scmp.ne.s32.totalorder %s103, %s119
      %p121 = scmp.eq.s32.totalorder %s23, 0
      %p122 = por %p120, %p121
      %s124 = sadd.s32 %s123, 1
      %p127 = scmp.eq.s32.totalorder %s17, 1
      %p128 = scmp.ne.s32.totalorder %s123, %s125
      %p129 = scmp.eq.s32.totalorder %s17, 0
      %p130 = por %p128, %p129
      %p131 = scmp.ne.s32.totalorder %s123, %s125
      %p132 = scmp.eq.s32.totalorder %s22, 1
      %p133 = por %p131, %p132
      %p134 = scmp.ne.s32.totalorder %s125, %s126
      %p135 = scmp.eq.s32.totalorder %s22, 0
      %p136 = por %p134, %p135
      %p137 = scmp.ne.s32.totalorder %s125, %s126
      %p138 = scmp.eq.s32.totalorder %s23, 1
      %p139 = por %p137, %p138
      %p141 = scmp.ne.s32.totalorder %s126, %s140
      %p142 = scmp.eq.s32.totalorder %s23, 0
      %p143 = por %p141, %p142
      %s145 = sadd.s32 %s144, 1
      %p148 = scmp.eq.s32.totalorder %s17, 1
      %p149 = scmp.ne.s32.totalorder %s144, %s146
      %p150 = scmp.eq.s32.totalorder %s17, 0
      %p151 = por %p149, %p150
      %p152 = scmp.ne.s32.totalorder %s144, %s146
      %p153 = scmp.eq.s32.totalorder %s22, 1
      %p154 = por %p152, %p153
      %p155 = scmp.ne.s32.totalorder %s146, %s147
      %p156 = scmp.eq.s32.totalorder %s22, 0
      %p157 = por %p155, %p156
      %p158 = scmp.ne.s32.totalorder %s146, %s147
      %p159 = scmp.eq.s32.totalorder %s23, 1
      %p160 = por %p158, %p159
      %p162 = scmp.ne.s32.totalorder %s147, %s161
      %p163 = scmp.eq.s32.totalorder %s23, 0
      %p164 = por %p162, %p163
      %s165 = ssub.s32 %s24, %s36
      %s166 = ssub.s32 %s25, %s32
      %s167 = sor.u32 %s165, %s166
      %p168 = scmp.eq.s32.totalorder %s167, 0
      %s170 = sadd.s32 %s169, 1
      %s171 = scalar_select %p168, %s169, %s170
      %p174 = pneg %p168
      %p175 = scmp.eq.s32.totalorder %s17, 1
      %p176 = por %p174, %p175
      %p177 = scmp.ne.s32.totalorder %s169, %s172
      %p178 = scmp.eq.s32.totalorder %s17, 0
      %p179 = por %p177, %p178
      %p180 = scmp.ne.s32.totalorder %s169, %s172
      %p181 = scmp.eq.s32.totalorder %s22, 1
      %p182 = por %p180, %p181
      %p183 = scmp.ne.s32.totalorder %s172, %s173
      %p184 = scmp.eq.s32.totalorder %s22, 0
      %p185 = por %p183, %p184
      %p186 = scmp.ne.s32.totalorder %s172, %s173
      %p187 = scmp.eq.s32.totalorder %s23, 1
      %p188 = por %p186, %p187
      %p190 = scmp.ne.s32.totalorder %s173, %s189
      %p191 = scmp.eq.s32.totalorder %s23, 0
      %p192 = por %p190, %p191
      %p193 = scmp.le.s32.totalorder 1, %s17
      %p194 = scmp.lt.s32.totalorder %s17, 3
      %p195 = pnand %p193, %p194
      %p196 = pneg %p195
      // Predicated region
      $region9: #{tpu_custom_call.1} parent=5 // pred_check
        _
      $region10: #{tpu_custom_call.1} parent=5 // pred_check_branch
        %198 = sbr.rel (%p195) target = $region12
      $region11: #{tpu_custom_call.1} parent=5 // pred_region
        %s199 = ssub.s32 %s17, 1
        // Predicated region
        $region13: #{tpu_custom_call.1} parent=11 // pred_check
          %p200 = pneg %p136
        $region14: #{tpu_custom_call.1} parent=11 // pred_check_branch
          %202 = sbr.rel (%p200) target = $region16
        $region15: #{tpu_custom_call.1} parent=11 // pred_region
          _
        $region16: #{tpu_custom_call.1} parent=11 // pred_fallthru
          _
        // Predicated region
        $region17: #{tpu_custom_call.1} parent=11 // pred_check
          %p203 = pneg %p157
        $region18: #{tpu_custom_call.1} parent=11 // pred_check_branch
          %205 = sbr.rel (%p203) target = $region20
        $region19: #{tpu_custom_call.1} parent=11 // pred_region
          _
        $region20: #{tpu_custom_call.1} parent=11 // pred_fallthru
          _
      $region12: #{tpu_custom_call.1} parent=5 // pred_fallthru
        _
      %p206 = scmp.lt.s32.totalorder %s17, 2
      // Predicated region
      $region21: #{tpu_custom_call.1} parent=5 // pred_check
        %p207 = pneg %p206
      $region22: #{tpu_custom_call.1} parent=5 // pred_check_branch
        %209 = sbr.rel (%p207) target = $region24
      $region23: #{tpu_custom_call.1} parent=5 // pred_region
        // Predicated region
        $region25: #{tpu_custom_call.1} parent=23 // pred_check
          %p210 = pneg %p51
        $region26: #{tpu_custom_call.1} parent=23 // pred_check_branch
          %212 = sbr.rel (%p210) target = $region28
        $region27: #{tpu_custom_call.1} parent=23 // pred_region
          %p213 = scmp.lt.s32.totalorder %s24, 1
          %s214 = scalar_select %p213, %s24, 1
          %p215 = scmp.lt.s32.totalorder %s25, 0
          %s216 = scalar_select %p215, %s25, 0
          %s217 = sadd.s32 %s216, %s214
          %s218 = smul.addr %s217, 8
          %s219 = scalar_lea.vmem %s0, %s218
        $region28: #{tpu_custom_call.1} parent=23 // pred_fallthru
          _
        // Predicated region
        $region29: #{tpu_custom_call.1} parent=23 // pred_check
          %p220 = pneg %p81
        $region30: #{tpu_custom_call.1} parent=23 // pred_check_branch
          %222 = sbr.rel (%p220) target = $region32
        $region31: #{tpu_custom_call.1} parent=23 // pred_region
          %s223 = sand.u32 %s71, 1
          %s224 = scalar_lea.sflag [#allocation3], %s223
          %s225 = sand.u32 %s71, 1
          %s226 = smul.addr %s225, 8
          %s227 = scalar_lea.vmem [#allocation2], %s226
          %s228 = sadd.s32 %s25, 1
          %s230 = ssub.s32 128, 128
          %231 = vsyncadd %s224, %s230
          %s232 = smul.addr %s24, 2
          %s233 = sadd.s32 %s228, %s232
          %s234 = smul.addr %s233, 128
          %s235 = scalar_lea.hbm %s1, %s234
          %s237 = sshll.u32 %s227, 4
          %s238 = int_to_ptr.vmem [resolvable:$true] %s237
          %240 = dma.hbm_to_vmem [thread:$0]  %s235, 128, %s238, %s224
        $region32: #{tpu_custom_call.1} parent=23 // pred_fallthru
          _
        // Predicated region
        $region33: #{tpu_custom_call.1} parent=23 // pred_check
          %p241 = pneg %p109
        $region34: #{tpu_custom_call.1} parent=23 // pred_check_branch
          %243 = sbr.rel (%p241) target = $region36
        $region35: #{tpu_custom_call.1} parent=23 // pred_region
          %p244 = scmp.lt.s32.totalorder %s24, 1
          %s245 = scalar_select %p244, %s24, 1
          %p246 = scmp.lt.s32.totalorder %s25, 0
          %s247 = scalar_select %p246, %s25, 0
          %s248 = sadd.s32 %s247, %s245
          %s249 = smul.addr %s248, 8
          %s250 = scalar_lea.vmem %s2, %s249
        $region36: #{tpu_custom_call.1} parent=23 // pred_fallthru
          _
      $region24: #{tpu_custom_call.1} parent=5 // pred_fallthru
        _
      %p251 = scmp.le.s32.totalorder 1, %s17
      %p252 = scmp.lt.s32.totalorder %s17, 3
      %p253 = pnand %p251, %p252
      %p254 = pneg %p253
      // Predicated region
      $region37: #{tpu_custom_call.1} parent=5 // pred_check
        _
      $region38: #{tpu_custom_call.1} parent=5 // pred_check_branch
        %256 = sbr.rel (%p253) target = $region40
      $region39: #{tpu_custom_call.1} parent=5 // pred_region
        %s257 = ssub.s32 %s17, 1
        %s258 = sand.u32 %s74, 1
        %s259 = scalar_lea.sflag [#allocation3], %s258
        %s260 = sand.u32 %s74, 1
        %s261 = smul.addr %s260, 8
        %s262 = scalar_lea.vmem [#allocation2], %s261
        // Predicated region
        $region41: #{tpu_custom_call.1} parent=39 // pred_check
          %p263 = pneg %p87
        $region42: #{tpu_custom_call.1} parent=39 // pred_check_branch
          %265 = sbr.rel (%p263) target = $region44
        $region43: #{tpu_custom_call.1} parent=39 // pred_region
          %266 = dma.done %s259, 128
        $region44: #{tpu_custom_call.1} parent=39 // pred_fallthru
          _
        %p267 = scmp.lt.s32.totalorder %s26, 1
        %s268 = scalar_select %p267, %s26, 1
        %p269 = scmp.lt.s32.totalorder %s27, 0
        %s270 = scalar_select %p269, %s27, 0
        %s271 = sadd.s32 %s270, %s268
        %s272 = smul.addr %s271, 8
        %s273 = scalar_lea.vmem %s0, %s272
        %p274 = pneg %p57
        %p275 = pneg %p54
        %s276 = sand.u32 %s74, 1
        %s277 = scalar_lea.sflag [#allocation3], %s276
        %s278 = sand.u32 %s74, 1
        %s279 = smul.addr %s278, 8
        %s280 = scalar_lea.vmem [#allocation2], %s279
        %p281 = pneg %p87
        %p282 = pneg %p84
        %p283 = scmp.lt.s32.totalorder %s26, 1
        %s284 = scalar_select %p283, %s26, 1
        %p285 = scmp.lt.s32.totalorder %s27, 0
        %s286 = scalar_select %p285, %s27, 0
        %s287 = sadd.s32 %s286, %s284
        %s288 = smul.addr %s287, 8
        %s289 = scalar_lea.vmem %s2, %s288
        %p290 = pneg %p115
        %p291 = pneg %p112
        %p292 = pneg %p136
        %p293 = pneg %p133
        %p294 = pneg %p157
        %p295 = pneg %p154
        %p296 = pneg %p185
        %p297 = pneg %p182
        %s298 = sand.u32 %s172, 1
        %s299 = scalar_lea.sflag [#allocation4], %s298
        %s300 = sand.u32 %s172, 1
        %s301 = smul.addr %s300, 8
        %s302 = scalar_lea.vmem [#allocation5], %s301
        %p303 = scmp.lt.s32.totalorder %s26, 1
        %s304 = scalar_select %p303, %s26, 1
        %p305 = scmp.lt.s32.totalorder %s27, 0
        %s306 = scalar_select %p305, %s27, 0
        %s307 = sadd.s32 %s306, %s304
        %s308 = smul.addr %s307, 8
        %s309 = scalar_lea.vmem %s0, %s308
        %s310 = sadd.s32 %s27, 1
        %p311 = scmp.lt.s32.totalorder %s26, 1
        %s312 = scalar_select %p311, %s26, 1
        %p313 = scmp.lt.s32.totalorder %s27, 0
        %s314 = scalar_select %p313, %s27, 0
        %s315 = sadd.s32 %s314, %s312
        %s316 = smul.addr %s315, 8
        %s317 = scalar_lea.vmem %s2, %s316
        %v318 = vld [vmem:[%s309] sm:$0xff]
        %v319 = vld [vmem:[%s262] sm:$0xff]
        %v320 = vld [vmem:[%s317] sm:$0xff]
        %322 = vset.pattern.permute.xlu0 0
        %323 = vperm.xlu0 %322, %v320
        %v324 = vpop.permute.xlu0 %323
        %v326 = vmul.f32 %v319, %v324
        %v327 = vadd.f32 %v318, %v326
        %vm328 = vcmask 261120
        %v329 = vsel %vm328, %v327, 0.0
        %330 = vadd.xlane.f32.xlu0 %v329
        %v331 = vpop.xlane.xlu0 %330
        %v332 = vrcp.pop 32.0
        %v333 = vmul.f32 %v331, %v332
        %v334 = vsub.f32 %v327, %v333
        %v335 = vmul.f32 %v334, %v334
        %v336 = vsel %vm328, %v335, 0.0
        %337 = vadd.xlane.f32.xlu0 %v336
        %v338 = vpop.xlane.xlu0 %337
        %v339 = vmul.f32 %v338, %v332
        %v340 = vadd.f32 %v339, 1e-05
        %v341 = vrsqrt.pop %v340
        %v342 = vmul.f32 %v334, %v341
        %v343 = vld [vmem:[%s3] sm:$0x1]
        %v344 = vld [vmem:[%s4] sm:$0x1]
        %v346 = vlaneseq
        %v347 = vshrl.u32 %v346, 7
        %v348 = vsub.s32 0, %v347
        %v349 = vrot.slane %v343, %v348
        %v351 = vmul.f32 %v342, %v349
        %v353 = vlaneseq
        %v354 = vshrl.u32 %v353, 7
        %v355 = vsub.s32 0, %v354
        %v356 = vrot.slane %v344, %v355
        %v358 = vadd.f32 %v351, %v356
        %359 = vst.msk [vmem:[%s302] sm:$0xff] %vm328, %v358
        %s360 = sand.u32 %s172, 1
        %s361 = scalar_lea.sflag [#allocation4], %s360
        %s362 = sand.u32 %s172, 1
        %s363 = smul.addr %s362, 8
        %s364 = scalar_lea.vmem [#allocation5], %s363
        // Predicated region
        $region45: #{tpu_custom_call.1} parent=39 // pred_check
          %p365 = pneg %p182
        $region46: #{tpu_custom_call.1} parent=39 // pred_check_branch
          %367 = sbr.rel (%p365) target = $region48
        $region47: #{tpu_custom_call.1} parent=39 // pred_region
          %s369 = ssub.s32 128, 128
          %370 = vsyncadd %s361, %s369
          %s371 = sadd.s32 %s27, %s26
          %s372 = smul.addr %s371, 128
          %s373 = scalar_lea.hbm %s5, %s372
          %s375 = sshll.u32 %s364, 4
          %s376 = int_to_ptr.vmem [resolvable:$true] %s375
          %378 = dma.vmem_to_hbm [thread:$0]  %s376, 128, %s373, %s361
        $region48: #{tpu_custom_call.1} parent=39 // pred_fallthru
          _
      $region40: #{tpu_custom_call.1} parent=5 // pred_fallthru
        _
      %p379 = scmp.le.s32.totalorder 2, %s17
      // Predicated region
      $region49: #{tpu_custom_call.1} parent=5 // pred_check
        %p380 = pneg %p379
      $region50: #{tpu_custom_call.1} parent=5 // pred_check_branch
        %382 = sbr.rel (%p380) target = $region52
      $region51: #{tpu_custom_call.1} parent=5 // pred_region
        %s383 = ssub.s32 %s17, 2
        // Predicated region
        $region53: #{tpu_custom_call.1} parent=51 // pred_check
          %p384 = pneg %p188
        $region54: #{tpu_custom_call.1} parent=51 // pred_check_branch
          %386 = sbr.rel (%p384) target = $region56
        $region55: #{tpu_custom_call.1} parent=51 // pred_region
          %s387 = sand.u32 %s173, 1
          %s388 = scalar_lea.sflag [#allocation4], %s387
          %s389 = sand.u32 %s173, 1
          %s390 = smul.addr %s389, 8
          %s391 = scalar_lea.vmem [#allocation5], %s390
          %392 = dma.done %s388, 128
        $region56: #{tpu_custom_call.1} parent=51 // pred_fallthru
          _
      $region52: #{tpu_custom_call.1} parent=5 // pred_fallthru
        _
    $region6: #{tpu_custom_call.1} parent=1 // loop_footer
      %s21 = sadd.s32 1, %s17
    $region7: #{tpu_custom_call.1} parent=1 // loop_footer_branch
      %16 = sbr.rel target = $region3
    $region8: #{tpu_custom_call.1} parent=1 // loop_exit
      _
    %393 = vsyncpa [#allocation3], 1
    %s394 = scalar_lea.sflag [#allocation3], 1
    %395 = vsyncpa %s394, 1
    %396 = vsyncpa [#allocation4], 1
    %s397 = scalar_lea.sflag [#allocation4], 1
    %398 = vsyncpa %s397, 1

</llo_original>
